<compile_context>
chip_gen: v6e
topology: v6e:2x2x1
jax: 0.10.0
libtpu: 0.0.40
codegen_flags: <defaults>
</compile_context>

<pallas_src>
import functools

import jax
import jax.numpy as jnp
from jax.experimental import pallas as pl
from jax.experimental.pallas import tpu as pltpu


def _round_up(n, m):
    return ((n + m - 1) // m) * m


# ----------------------------- Pallas kernel -------------------------------
def actor_kernel(obs_ref,                       # [bm, obs_pad]   bf16
                 w1_ref, w2_ref, w3_ref,        # bf16 weights [in_pad, out_pad]
                 vec_ref,                       # [8, max_pad] f32 packed vectors
                 mu_ref,                        # [bm, action_pad] f32 output
                 *, feature_dim, feature_pad, hidden_pad, action_pad):
    vec = vec_ref[...]                          # rows: b1, ln_g, ln_b, b2, b3
    b1 = vec[0:1, :feature_pad]
    g = vec[1:2, :feature_pad]
    beta = vec[2:3, :feature_pad]
    b2 = vec[3:4, :hidden_pad]
    b3 = vec[4:5, :action_pad]

    x = obs_ref[...]                            # bf16, padded cols are zero

    # ---- trunk: Linear -> LayerNorm -> Tanh (f32 accumulation / elementwise)
    h = jnp.dot(x, w1_ref[...], preferred_element_type=jnp.float32) + b1
    inv_f = 1.0 / feature_dim
    # padded columns of h are exactly zero, so sum over all lanes is exact.
    mean = jnp.sum(h, axis=-1, keepdims=True) * inv_f
    col = jax.lax.broadcasted_iota(jnp.int32, h.shape, 1)
    centered = jnp.where(col < feature_dim, h - mean, 0.0)
    var = jnp.sum(centered * centered, axis=-1, keepdims=True) * inv_f
    h = jnp.tanh(centered * jax.lax.rsqrt(var + 1e-5) * g + beta)

    # ---- policy: Linear -> ReLU -> Linear -> Tanh
    z = jnp.dot(h.astype(jnp.bfloat16), w2_ref[...],
                preferred_element_type=jnp.float32) + b2
    z = jnp.maximum(z, 0.0)
    mu = jnp.dot(z.astype(jnp.bfloat16), w3_ref[...],
                 preferred_element_type=jnp.float32) + b3
    mu_ref[...] = jnp.tanh(mu).astype(mu_ref.dtype)


# ------------------------------ wrapper -------------------------------------
def actor_forward(obs, std, kparams, *, block_batch=1024):
    """Returns (mu, std) — the parameters of the TruncatedNormal `dist`."""
    B, obs_dim = obs.shape
    feature_dim = kparams["feature_dim"]
    action_dim = kparams["action_dim"]
    w1, w2, w3, vec = kparams["w1"], kparams["w2"], kparams["w3"], kparams["vec"]
    obs_pad, feature_pad = w1.shape
    hidden_pad = w2.shape[1]
    action_pad = w3.shape[1]

    bm = _round_up(min(block_batch, _round_up(B, 8)), 8)
    Bp = _round_up(B, bm)

    # Zero-pad obs (rows to a bm multiple, cols to a 128 multiple), cast bf16.
    obs_p = jnp.zeros((Bp, obs_pad), jnp.bfloat16)
    obs_p = obs_p.at[:B, :obs_dim].set(obs.astype(jnp.bfloat16))

    grid = (Bp // bm,)

    flops = 2 * Bp * (obs_pad * feature_pad + feature_pad * hidden_pad
                      + hidden_pad * action_pad)
    transcendentals = Bp * (feature_pad + action_pad)        # tanh
    bytes_accessed = (obs_p.size * 2 + w1.size * 2 + w2.size * 2 + w3.size * 2
                      + vec.size * 4 + Bp * action_pad * 4)

    kernel = functools.partial(
        actor_kernel, feature_dim=feature_dim, feature_pad=feature_pad,
        hidden_pad=hidden_pad, action_pad=action_pad)

    mu_p = pl.pallas_call(
        kernel,
        out_shape=jax.ShapeDtypeStruct((Bp, action_pad), jnp.float32),
        grid=grid,
        in_specs=[
            pl.BlockSpec((bm, obs_pad), lambda i: (i, 0)),           # obs tile
            pl.BlockSpec((obs_pad, feature_pad), lambda i: (0, 0)),  # resident
            pl.BlockSpec((feature_pad, hidden_pad), lambda i: (0, 0)),
            pl.BlockSpec((hidden_pad, action_pad), lambda i: (0, 0)),
            pl.BlockSpec(vec.shape, lambda i: (0, 0)),               # packed vecs
        ],
        out_specs=pl.BlockSpec((bm, action_pad), lambda i: (i, 0)),
        compiler_params=pltpu.CompilerParams(
            dimension_semantics=("parallel",)),
        cost_estimate=pl.CostEstimate(
            flops=flops, transcendentals=transcendentals,
            bytes_accessed=bytes_accessed),
    )(obs_p, w1, w2, w3, vec)

    mu = mu_p[:B, :action_dim]
    # std is a constant broadcast — no reason to burn an output DMA on it.
    std_out = jnp.full((B, action_dim), std, jnp.float32)
    return mu, std_out


# --------------------------- parameter init ---------------------------------
def orthogonal_(key, out_features, in_features, gain=1.0):
    """Replicates torch.nn.init.orthogonal_ for a [out, in] Linear weight."""
    rows, cols = out_features, in_features
    flat = jax.random.normal(key, (rows, cols), dtype=jnp.float32)
    transposed = rows < cols
    if transposed:
        flat = flat.T
    q, r = jnp.linalg.qr(flat)
    q = q * jnp.sign(jnp.diag(r))
    if transposed:
        q = q.T
    return gain * q  # shape [out, in]


def make_actor_params(key, obs_type, obs_dim, action_dim, feature_dim, hidden_dim):
    feature_dim = feature_dim if obs_type == "pixels" else hidden_dim
    k1, k2, k3 = jax.random.split(key, 3)
    # PyTorch Linear weight is [out, in]; transpose to [in, out] for the kernel.
    return {
        "w1": orthogonal_(k1, feature_dim, obs_dim).T,
        "b1": jnp.zeros((feature_dim,), jnp.float32),
        "ln_g": jnp.ones((feature_dim,), jnp.float32),
        "ln_b": jnp.zeros((feature_dim,), jnp.float32),
        "w2": orthogonal_(k2, hidden_dim, feature_dim).T,
        "b2": jnp.zeros((hidden_dim,), jnp.float32),
        "w3": orthogonal_(k3, action_dim, hidden_dim).T,
        "b3": jnp.zeros((action_dim,), jnp.float32),
    }


def pack_actor_params(p):
    """Pad weights to 128-multiples (bf16) and pack all 1-D vectors (f32)."""
    obs_dim, feature_dim = p["w1"].shape
    hidden_dim = p["w2"].shape[1]
    action_dim = p["w3"].shape[1]
    obs_pad = _round_up(obs_dim, 128)
    feature_pad = _round_up(feature_dim, 128)
    hidden_pad = _round_up(hidden_dim, 128)
    action_pad = _round_up(action_dim, 128)
    max_pad = max(feature_pad, hidden_pad, action_pad)

    def pad_w(w, rp, cp):
        out = jnp.zeros((rp, cp), jnp.float32)
        return out.at[:w.shape[0], :w.shape[1]].set(w).astype(jnp.bfloat16)

    vec = jnp.zeros((8, max_pad), jnp.float32)
    vec = vec.at[0, :feature_dim].set(p["b1"])
    vec = vec.at[1, :feature_dim].set(p["ln_g"])
    vec = vec.at[2, :feature_dim].set(p["ln_b"])
    vec = vec.at[3, :hidden_dim].set(p["b2"])
    vec = vec.at[4, :action_dim].set(p["b3"])

    return {
        "w1": pad_w(p["w1"], obs_pad, feature_pad),
        "w2": pad_w(p["w2"], feature_pad, hidden_pad),
        "w3": pad_w(p["w3"], hidden_pad, action_pad),
        "vec": vec,
        "feature_dim": feature_dim,
        "action_dim": action_dim,
    }


# ----------------------------- references -----------------------------------
def actor_forward_ref_bf16(obs, std, p):
    """Same math as the kernel: bf16 MXU inputs, f32 accumulation/elementwise."""
    def dot_bf16(a, w):
        return jnp.dot(a.astype(jnp.bfloat16), w.astype(jnp.bfloat16),
                       preferred_element_type=jnp.float32)
    h = dot_bf16(obs, p["w1"]) + p["b1"]
    mean = jnp.mean(h, axis=-1, keepdims=True)
    var = jnp.mean((h - mean) ** 2, axis=-1, keepdims=True)
    h = jnp.tanh((h - mean) * jax.lax.rsqrt(var + 1e-5) * p["ln_g"] + p["ln_b"])
    z = jnp.maximum(dot_bf16(h, p["w2"]) + p["b2"], 0.0)
    mu = jnp.tanh(dot_bf16(z, p["w3"]) + p["b3"])
    return mu, jnp.full_like(mu, std)


def actor_forward_ref_f32(obs, std, p):
    """Pure f32 reference of the PyTorch module."""
    h = obs @ p["w1"] + p["b1"]
    mean = jnp.mean(h, axis=-1, keepdims=True)
    var = jnp.mean((h - mean) ** 2, axis=-1, keepdims=True)
    h = jnp.tanh((h - mean) * jax.lax.rsqrt(var + 1e-5) * p["ln_g"] + p["ln_b"])
    z = jnp.maximum(h @ p["w2"] + p["b2"], 0.0)
    mu = jnp.tanh(z @ p["w3"] + p["b3"])
    return mu, jnp.full_like(mu, std)


if __name__ == "__main__":
    key = jax.random.PRNGKey(0)
    k_params, k_obs = jax.random.split(key)

    # Small shapes consistent with the module.
    obs_type = "pixels"
    batch, obs_dim, action_dim, feature_dim, hidden_dim = 8, 24, 16, 32, 64

    params = make_actor_params(k_params, obs_type, obs_dim, action_dim,
                               feature_dim, hidden_dim)
    kparams = pack_actor_params(params)
    obs = jax.random.normal(k_obs, (batch, obs_dim), dtype=jnp.float32)
    std = 0.2

    mu, std_out = actor_forward(obs, std, kparams)
    jax.block_until_ready((mu, std_out))

    mu_bf, _ = actor_forward_ref_bf16(obs, std, params)
    mu_f32, std_ref = actor_forward_ref_f32(obs, std, params)

    assert mu.shape == (batch, action_dim)
    # Matches the bf16-input / f32-accumulate math the kernel performs ...
    assert jnp.allclose(mu, mu_bf, atol=2e-3, rtol=2e-3)
    # ... and the full-precision PyTorch semantics up to bf16 weight rounding.
    assert jnp.allclose(mu, mu_f32, atol=3e-2, rtol=3e-2)
    assert jnp.allclose(std_out, std_ref, atol=1e-6)

    # TODO(synk): TruncatedNormal.sample()/rsample clamping is a downstream
    # stochastic op on (mu, std); the kernel returns the distribution params.
    print("KERNEL_OK")
</pallas_src>

<mosaic_0001>
module attributes {stable_mosaic.version = 11 : i64} {
  func.func @actor_kernel(%arg0: i32, %arg1: memref<8x128xbf16, #tpu.memory_space<vmem>>, %arg2: memref<128x128xbf16, #tpu.memory_space<vmem>>, %arg3: memref<128x128xbf16, #tpu.memory_space<vmem>>, %arg4: memref<128x128xbf16, #tpu.memory_space<vmem>>, %arg5: memref<8x128xf32, #tpu.memory_space<vmem>>, %arg6: memref<8x128xf32, #tpu.memory_space<vmem>>) attributes {dimension_semantics = [#tpu.dimension_semantics<parallel>], iteration_bounds = array<i64: 1>, scalar_prefetch = 0 : i64, scratch_operands = 0 : i64, tpu.core_type = #tpu.core_type<tc>, window_params = [{transform_indices = @transform_0, window_bounds = array<i64: 8, 128>}, {pipeline_mode = #tpu.pipeline_mode<synchronous>, transform_indices = @transform_1, window_bounds = array<i64: 128, 128>}, {pipeline_mode = #tpu.pipeline_mode<synchronous>, transform_indices = @transform_2, window_bounds = array<i64: 128, 128>}, {pipeline_mode = #tpu.pipeline_mode<synchronous>, transform_indices = @transform_3, window_bounds = array<i64: 128, 128>}, {pipeline_mode = #tpu.pipeline_mode<synchronous>, transform_indices = @transform_4, window_bounds = array<i64: 8, 128>}, {transform_indices = @transform_5, window_bounds = array<i64: 8, 128>}]} {
    %c0 = arith.constant 0 : index
    %c0_0 = arith.constant 0 : index
    %0 = vector.load %arg5[%c0, %c0_0] : memref<8x128xf32, #tpu.memory_space<vmem>>, vector<8x128xf32>
    %1 = vector.extract_strided_slice %0 {offsets = [0, 0], sizes = [1, 128], strides = [1, 1]} : vector<8x128xf32> to vector<1x128xf32>
    %2 = vector.extract_strided_slice %0 {offsets = [1, 0], sizes = [1, 128], strides = [1, 1]} : vector<8x128xf32> to vector<1x128xf32>
    %3 = vector.extract_strided_slice %0 {offsets = [2, 0], sizes = [1, 128], strides = [1, 1]} : vector<8x128xf32> to vector<1x128xf32>
    %4 = vector.extract_strided_slice %0 {offsets = [3, 0], sizes = [1, 128], strides = [1, 1]} : vector<8x128xf32> to vector<1x128xf32>
    %5 = vector.extract_strided_slice %0 {offsets = [4, 0], sizes = [1, 128], strides = [1, 1]} : vector<8x128xf32> to vector<1x128xf32>
    %c0_1 = arith.constant 0 : index
    %c0_2 = arith.constant 0 : index
    %6 = vector.load %arg1[%c0_1, %c0_2] : memref<8x128xbf16, #tpu.memory_space<vmem>>, vector<8x128xbf16>
    %c0_3 = arith.constant 0 : index
    %c0_4 = arith.constant 0 : index
    %7 = vector.load %arg2[%c0_3, %c0_4] : memref<128x128xbf16, #tpu.memory_space<vmem>>, vector<128x128xbf16>
    %cst = arith.constant dense<0.000000e+00> : vector<8x128xf32>
    %8 = tpu.matmul %6, %7, %cst {dimension_numbers = #tpu.dot_dimension_numbers<[1], [0], [0], [1], [0, 0, 1, 1], [], []>} : vector<8x128xbf16>, vector<128x128xbf16>, vector<8x128xf32> -> vector<8x128xf32>
    %9 = vector.broadcast %1 : vector<1x128xf32> to vector<8x128xf32>
    %10 = arith.addf %8, %9 : vector<8x128xf32>
    %cst_5 = arith.constant dense<0.000000e+00> : vector<8xf32>
    %11 = vector.multi_reduction <add>, %10, %cst_5 [1] : vector<8x128xf32> to vector<8xf32>
    %12 = vector.shape_cast %11 : vector<8xf32> to vector<8x1xf32>
    %cst_6 = arith.constant 3.125000e-02 : f32
    %13 = vector.broadcast %cst_6 : f32 to vector<8x1xf32>
    %14 = arith.mulf %12, %13 : vector<8x1xf32>
    %15 = tpu.iota {dimensions = array<i32: 1>} : vector<8x128xi32>
    %c32_i32 = arith.constant 32 : i32
    %16 = vector.broadcast %c32_i32 : i32 to vector<8x128xi32>
    %17 = arith.cmpi slt, %15, %16 : vector<8x128xi32>
    %18 = vector.broadcast %14 : vector<8x1xf32> to vector<8x128xf32>
    %19 = arith.subf %10, %18 : vector<8x128xf32>
    %cst_7 = arith.constant 0.000000e+00 : f32
    %20 = vector.broadcast %cst_7 : f32 to vector<8x128xf32>
    %21 = arith.select %17, %19, %20 : vector<8x128xi1>, vector<8x128xf32>
    %22 = arith.mulf %21, %21 : vector<8x128xf32>
    %cst_8 = arith.constant dense<0.000000e+00> : vector<8xf32>
    %23 = vector.multi_reduction <add>, %22, %cst_8 [1] : vector<8x128xf32> to vector<8xf32>
    %24 = vector.shape_cast %23 : vector<8xf32> to vector<8x1xf32>
    %cst_9 = arith.constant 3.125000e-02 : f32
    %25 = vector.broadcast %cst_9 : f32 to vector<8x1xf32>
    %26 = arith.mulf %24, %25 : vector<8x1xf32>
    %cst_10 = arith.constant 9.99999974E-6 : f32
    %27 = vector.broadcast %cst_10 : f32 to vector<8x1xf32>
    %28 = arith.addf %26, %27 : vector<8x1xf32>
    %29 = math.rsqrt %28 : vector<8x1xf32>
    %30 = vector.broadcast %29 : vector<8x1xf32> to vector<8x128xf32>
    %31 = arith.mulf %21, %30 : vector<8x128xf32>
    %32 = vector.broadcast %2 : vector<1x128xf32> to vector<8x128xf32>
    %33 = arith.mulf %31, %32 : vector<8x128xf32>
    %34 = vector.broadcast %3 : vector<1x128xf32> to vector<8x128xf32>
    %35 = arith.addf %33, %34 : vector<8x128xf32>
    %36 = math.tanh %35 : vector<8x128xf32>
    %37 = arith.truncf %36 : vector<8x128xf32> to vector<8x128xbf16>
    %c0_11 = arith.constant 0 : index
    %c0_12 = arith.constant 0 : index
    %38 = vector.load %arg3[%c0_11, %c0_12] : memref<128x128xbf16, #tpu.memory_space<vmem>>, vector<128x128xbf16>
    %cst_13 = arith.constant dense<0.000000e+00> : vector<8x128xf32>
    %39 = tpu.matmul %37, %38, %cst_13 {dimension_numbers = #tpu.dot_dimension_numbers<[1], [0], [0], [1], [0, 0, 1, 1], [], []>} : vector<8x128xbf16>, vector<128x128xbf16>, vector<8x128xf32> -> vector<8x128xf32>
    %40 = vector.broadcast %4 : vector<1x128xf32> to vector<8x128xf32>
    %41 = arith.addf %39, %40 : vector<8x128xf32>
    %cst_14 = arith.constant 0.000000e+00 : f32
    %42 = vector.broadcast %cst_14 : f32 to vector<8x128xf32>
    %43 = arith.maximumf %41, %42 : vector<8x128xf32>
    %44 = arith.truncf %43 : vector<8x128xf32> to vector<8x128xbf16>
    %c0_15 = arith.constant 0 : index
    %c0_16 = arith.constant 0 : index
    %45 = vector.load %arg4[%c0_15, %c0_16] : memref<128x128xbf16, #tpu.memory_space<vmem>>, vector<128x128xbf16>
    %cst_17 = arith.constant dense<0.000000e+00> : vector<8x128xf32>
    %46 = tpu.matmul %44, %45, %cst_17 {dimension_numbers = #tpu.dot_dimension_numbers<[1], [0], [0], [1], [0, 0, 1, 1], [], []>} : vector<8x128xbf16>, vector<128x128xbf16>, vector<8x128xf32> -> vector<8x128xf32>
    %47 = vector.broadcast %5 : vector<1x128xf32> to vector<8x128xf32>
    %48 = arith.addf %46, %47 : vector<8x128xf32>
    %49 = math.tanh %48 : vector<8x128xf32>
    %c0_18 = arith.constant 0 : index
    %c0_19 = arith.constant 0 : index
    %50 = vector.load %arg6[%c0_18, %c0_19] : memref<8x128xf32, #tpu.memory_space<vmem>>, vector<8x128xf32>
    tpu.vector_store %arg6[%c0_18, %c0_19], %49 {strides = array<i32>} : memref<8x128xf32, #tpu.memory_space<vmem>>, vector<8x128xf32>,
    return
  }
  func.func @transform_0(%arg0: i32) -> (i32, i32) {
    %c0_i32 = arith.constant 0 : i32
    %c0_i32_0 = arith.constant 0 : i32
    return %arg0, %c0_i32 : i32, i32
  }
  func.func @transform_1(%arg0: i32) -> (i32, i32) {
    %c0_i32 = arith.constant 0 : i32
    %c0_i32_0 = arith.constant 0 : i32
    %c0_i32_1 = arith.constant 0 : i32
    return %c0_i32, %c0_i32_0 : i32, i32
  }
  func.func @transform_2(%arg0: i32) -> (i32, i32) {
    %c0_i32 = arith.constant 0 : i32
    %c0_i32_0 = arith.constant 0 : i32
    %c0_i32_1 = arith.constant 0 : i32
    return %c0_i32, %c0_i32_0 : i32, i32
  }
  func.func @transform_3(%arg0: i32) -> (i32, i32) {
    %c0_i32 = arith.constant 0 : i32
    %c0_i32_0 = arith.constant 0 : i32
    %c0_i32_1 = arith.constant 0 : i32
    return %c0_i32, %c0_i32_0 : i32, i32
  }
  func.func @transform_4(%arg0: i32) -> (i32, i32) {
    %c0_i32 = arith.constant 0 : i32
    %c0_i32_0 = arith.constant 0 : i32
    %c0_i32_1 = arith.constant 0 : i32
    return %c0_i32, %c0_i32_0 : i32, i32
  }
  func.func @transform_5(%arg0: i32) -> (i32, i32) {
    %c0_i32 = arith.constant 0 : i32
    %c0_i32_0 = arith.constant 0 : i32
    return %arg0, %c0_i32 : i32, i32
  }
}

</mosaic_0001>

<llo_original>
// kernel: tpu_custom_call.1
$region0: #{tpu_custom_call.1}
  #allocation0 [shape = 'u32[]', space=smem, size = 0x4, offset = 0x4, fixed_abs, tag = 'smem constant byte address 0x4 - core index']
  #allocation1 [shape = 'u32[144,128]{1,0:T(1,128)}', space=vmem, size = 0x12000, scoped, tag = 'internal scratch']
  %s0 = inlined_call_operand.hbm [shape: bf16[8,128], index: 0, kind: input, shape index: {}]
  %s1 = inlined_call_operand.hbm [shape: bf16[128,128], index: 1, kind: input, shape index: {}]
  %s2 = inlined_call_operand.hbm [shape: bf16[128,128], index: 2, kind: input, shape index: {}]
  %s3 = inlined_call_operand.hbm [shape: bf16[128,128], index: 3, kind: input, shape index: {}]
  %s4 = inlined_call_operand.hbm [shape: f32[8,128], index: 4, kind: input, shape index: {}]
  %s5 = inlined_call_operand.hbm [shape: f32[8,128], index: 5, kind: output, shape index: {}]
  %s6 = sld [smem:[#allocation0]]
  $region50: #{tpu_custom_call.1} parent=0
    _
  %s8 = ssub.s32 1, %s6
  %s9 = scalar_select 0, %s8, %s6
  $region1: #{tpu_custom_call.1} parent=0
    #allocation2 [shape = 'u8[2048]{0}', space=vmem, size = 0x800, scoped, tag = 'input window, operand 0, single buffered']
    #allocation3 [shape = 's32[1]{0}', space=sflag, size = 0x4, scoped, tag = 'scoped memory for tpu_custom_call.1']
    #allocation4 [shape = 's32[1]{0}', space=sflag, size = 0x4, scoped, tag = 'scoped memory for tpu_custom_call.1']
    #allocation5 [shape = 'u8[32768]{0}', space=vmem, size = 0x8000, scoped, tag = 'input window, operand 1, single buffered']
    #allocation6 [shape = 's32[1]{0}', space=sflag, size = 0x4, scoped, tag = 'scoped memory for tpu_custom_call.1']
    #allocation7 [shape = 'u8[32768]{0}', space=vmem, size = 0x8000, scoped, tag = 'input window, operand 2, single buffered']
    #allocation8 [shape = 'u8[32768]{0}', space=vmem, size = 0x8000, scoped, tag = 'input window, operand 3, single buffered']
    #allocation9 [shape = 's32[1]{0}', space=sflag, size = 0x4, scoped, tag = 'scoped memory for tpu_custom_call.1']
    #allocation10 [shape = 'u8[4096]{0}', space=vmem, size = 0x1000, scoped, tag = 'input window, operand 4, single buffered']
    #allocation11 [shape = 'u8[4096]{0}', space=vmem, size = 0x1000, scoped, tag = 'output window, operand 0, single buffered']
    %10 = vsyncpa [#allocation3], 0
    %11 = vsyncpa [#allocation6], 0
    %12 = vsyncpa [#allocation9], 0
    %13 = vsyncpa [#allocation4], 0
    // Predicated region
    $region2: #{tpu_custom_call.1} parent=1 // pred_check
      _
    $region3: #{tpu_custom_call.1} parent=1 // pred_check_branch
      %15 = sbr.rel (0) target = $region5
    $region4: #{tpu_custom_call.1} parent=1 // pred_region
      %s17 = ssub.s32 64, 64
      %18 = vsyncadd [#allocation3], %s17
      %s20 = sshll.u32 [#allocation2], 4
      %s21 = int_to_ptr.vmem [resolvable:$true] %s20
      %23 = dma.hbm_to_vmem [thread:$0]  %s0, 64, %s21, [#allocation3]
    $region5: #{tpu_custom_call.1} parent=1 // pred_fallthru
      _
    // Predicated region
    $region6: #{tpu_custom_call.1} parent=1 // pred_check
      _
    $region7: #{tpu_custom_call.1} parent=1 // pred_check_branch
      %25 = sbr.rel (0) target = $region9
    $region8: #{tpu_custom_call.1} parent=1 // pred_region
      %s27 = ssub.s32 1024, 1024
      %28 = vsyncadd [#allocation6], %s27
      %s29 = sshll.u32 [#allocation5], 4
      %s30 = int_to_ptr.vmem [resolvable:$true] %s29
      %35 = dma.hbm_to_vmem [thread:$0]  %s1, 1024, %s30, [#allocation6], 64, 64, 4
    $region9: #{tpu_custom_call.1} parent=1 // pred_fallthru
      _
    // Predicated region
    $region10: #{tpu_custom_call.1} parent=1 // pred_check
      _
    $region11: #{tpu_custom_call.1} parent=1 // pred_check_branch
      %37 = sbr.rel (0) target = $region13
    $region12: #{tpu_custom_call.1} parent=1 // pred_region
      %s39 = ssub.s32 1024, 1024
      %40 = vsyncadd [#allocation6], %s39
      %s41 = sshll.u32 [#allocation7], 4
      %s42 = int_to_ptr.vmem [resolvable:$true] %s41
      %47 = dma.hbm_to_vmem [thread:$0]  %s2, 1024, %s42, [#allocation6], 64, 64, 4
    $region13: #{tpu_custom_call.1} parent=1 // pred_fallthru
      _
    // Predicated region
    $region14: #{tpu_custom_call.1} parent=1 // pred_check
      _
    $region15: #{tpu_custom_call.1} parent=1 // pred_check_branch
      %49 = sbr.rel (0) target = $region17
    $region16: #{tpu_custom_call.1} parent=1 // pred_region
      %s51 = ssub.s32 1024, 1024
      %52 = vsyncadd [#allocation9], %s51
      %s53 = sshll.u32 [#allocation8], 4
      %s54 = int_to_ptr.vmem [resolvable:$true] %s53
      %59 = dma.hbm_to_vmem [thread:$0]  %s3, 1024, %s54, [#allocation9], 64, 64, 4
    $region17: #{tpu_custom_call.1} parent=1 // pred_fallthru
      _
    // Predicated region
    $region18: #{tpu_custom_call.1} parent=1 // pred_check
      _
    $region19: #{tpu_custom_call.1} parent=1 // pred_check_branch
      %61 = sbr.rel (0) target = $region21
    $region20: #{tpu_custom_call.1} parent=1 // pred_region
      %s63 = ssub.s32 128, 128
      %64 = vsyncadd [#allocation9], %s63
      %s66 = sshll.u32 [#allocation10], 4
      %s67 = int_to_ptr.vmem [resolvable:$true] %s66
      %69 = dma.hbm_to_vmem [thread:$0]  %s4, 128, %s67, [#allocation9]
    $region21: #{tpu_custom_call.1} parent=1 // pred_fallthru
      _
    // Predicated region
    $region22: #{tpu_custom_call.1} parent=1 // pred_check
      _
    $region23: #{tpu_custom_call.1} parent=1 // pred_check_branch
      %71 = sbr.rel (0) target = $region25
    $region24: #{tpu_custom_call.1} parent=1 // pred_region
      %72 = dma.done [#allocation3], 64
    $region25: #{tpu_custom_call.1} parent=1 // pred_fallthru
      _
    // Predicated region
    $region26: #{tpu_custom_call.1} parent=1 // pred_check
      _
    $region27: #{tpu_custom_call.1} parent=1 // pred_check_branch
      %74 = sbr.rel (0) target = $region29
    $region28: #{tpu_custom_call.1} parent=1 // pred_region
      %75 = dma.done [#allocation6], 1024
    $region29: #{tpu_custom_call.1} parent=1 // pred_fallthru
      _
    // Predicated region
    $region30: #{tpu_custom_call.1} parent=1 // pred_check
      _
    $region31: #{tpu_custom_call.1} parent=1 // pred_check_branch
      %77 = sbr.rel (0) target = $region33
    $region32: #{tpu_custom_call.1} parent=1 // pred_region
      %78 = dma.done [#allocation6], 1024
    $region33: #{tpu_custom_call.1} parent=1 // pred_fallthru
      _
    // Predicated region
    $region34: #{tpu_custom_call.1} parent=1 // pred_check
      _
    $region35: #{tpu_custom_call.1} parent=1 // pred_check_branch
      %80 = sbr.rel (0) target = $region37
    $region36: #{tpu_custom_call.1} parent=1 // pred_region
      %81 = dma.done [#allocation9], 1024
    $region37: #{tpu_custom_call.1} parent=1 // pred_fallthru
      _
    // Predicated region
    $region38: #{tpu_custom_call.1} parent=1 // pred_check
      _
    $region39: #{tpu_custom_call.1} parent=1 // pred_check_branch
      %83 = sbr.rel (0) target = $region41
    $region40: #{tpu_custom_call.1} parent=1 // pred_region
      %84 = dma.done [#allocation9], 128
    $region41: #{tpu_custom_call.1} parent=1 // pred_fallthru
      _
    %v86 = vld [vmem:[#allocation10] sm:$0xff]
    %v87 = vld [vmem:[#allocation2] sm:$0xf]
    %v88 = vld [vmem:[#allocation5] sm:$0xf]
    %v89 = vld [vmem:[#allocation5 + $0x4] sm:$0xf]
    %v90 = vld [vmem:[#allocation5 + $0x8] sm:$0xf]
    %v91 = vld [vmem:[#allocation5 + $0xc] sm:$0xf]
    %v92 = vld [vmem:[#allocation5 + $0x10] sm:$0xf]
    %v93 = vld [vmem:[#allocation5 + $0x14] sm:$0xf]
    %v94 = vld [vmem:[#allocation5 + $0x18] sm:$0xf]
    %v95 = vld [vmem:[#allocation5 + $0x1c] sm:$0xf]
    %v96 = vld [vmem:[#allocation5 + $0x20] sm:$0xf]
    %v97 = vld [vmem:[#allocation5 + $0x24] sm:$0xf]
    %v98 = vld [vmem:[#allocation5 + $0x28] sm:$0xf]
    %v99 = vld [vmem:[#allocation5 + $0x2c] sm:$0xf]
    %v100 = vld [vmem:[#allocation5 + $0x30] sm:$0xf]
    %v101 = vld [vmem:[#allocation5 + $0x34] sm:$0xf]
    %v102 = vld [vmem:[#allocation5 + $0x38] sm:$0xf]
    %v103 = vld [vmem:[#allocation5 + $0x3c] sm:$0xf]
    %v104 = vlaneseq
    %v105 = vshrl.u32 %v104, 7
    %v106 = vsub.s32 0, %v105
    %v107 = vrot.slane %v86, %v106
    %v124 = vunpack.c.l.b16 %v88
    %v125 = vunpack.c.l.b16 %v89
    %v126 = vunpack.c.l.b16 %v90
    %v127 = vunpack.c.l.b16 %v91
    %v128 = vunpack.c.l.b16 %v92
    %v129 = vunpack.c.l.b16 %v93
    %v130 = vunpack.c.l.b16 %v94
    %v131 = vunpack.c.l.b16 %v95
    %v132 = vunpack.c.l.b16 %v96
    %v133 = vunpack.c.l.b16 %v97
    %v134 = vunpack.c.l.b16 %v98
    %v135 = vunpack.c.l.b16 %v99
    %v136 = vunpack.c.l.b16 %v100
    %v137 = vunpack.c.l.b16 %v101
    %v138 = vunpack.c.l.b16 %v102
    %v139 = vunpack.c.l.b16 %v103
    %v140 = vpack.c.b16 %v125, %v124
    %v141 = vpack.c.b16 %v127, %v126
    %v142 = vpack.c.b16 %v129, %v128
    %v143 = vpack.c.b16 %v131, %v130
    %v144 = vpack.c.b16 %v133, %v132
    %v145 = vpack.c.b16 %v135, %v134
    %v146 = vpack.c.b16 %v137, %v136
    %v147 = vpack.c.b16 %v139, %v138
    %156 = vmatprep.subr.bf16.mxu0 0
    %157 = vmatpush1.bf16.msra.mxu0 %v147
    %158 = vmatprep.subr.bf16.mxu0 0
    %159 = vmatpush1.bf16.msra.mxu0 %v146
    %160 = vmatprep.subr.bf16.mxu0 0
    %161 = vmatpush1.bf16.msra.mxu0 %v145
    %162 = vmatprep.subr.bf16.mxu0 0
    %163 = vmatpush1.bf16.msra.mxu0 %v144
    %164 = vmatprep.subr.bf16.mxu0 0
    %165 = vmatpush1.bf16.msra.mxu0 %v143
    %166 = vmatprep.subr.bf16.mxu0 0
    %167 = vmatpush1.bf16.msra.mxu0 %v142
    %168 = vmatprep.subr.bf16.mxu0 0
    %169 = vmatpush1.bf16.msra.mxu0 %v141
    %170 = vmatprep.subr.bf16.mxu0 0
    %171 = vmatpush1.bf16.msra.mxu0 %v140
    %172 = vmatprep.subr.bf16.mxu0 0
    %173 = vmatpush2.bf16.msra.mxu0 0
    %174 = vmatprep.subr.bf16.mxu0 0
    %175 = vmatpush2.bf16.msra.mxu0 0
    %176 = vmatprep.subr.bf16.mxu0 0
    %177 = vmatpush2.bf16.msra.mxu0 0
    %178 = vmatprep.subr.bf16.mxu0 0
    %179 = vmatpush2.bf16.msra.mxu0 0
    %180 = vmatprep.subr.bf16.mxu0 0
    %181 = vmatpush2.bf16.msra.mxu0 0
    %182 = vmatprep.subr.bf16.mxu0 0
    %183 = vmatpush2.bf16.msra.mxu0 0
    %184 = vmatprep.subr.bf16.mxu0 0
    %185 = vmatpush2.bf16.msra.mxu0 0
    %186 = vmatprep.subr.bf16.mxu0 0
    %187 = vmatpush2.bf16.msra.mxu0 0
    %188 = vmatprep.mubr.bf16.mxu0 0
    %189 = vmatmul.mubr.bf16.gmra.mxu0 %v87
    %v190 = vpop.f32.mrf.mxu0
    %v191 = vadd.f32 %v107, %v190
    %v192 = vpop.f32.mrf.mxu0
    %v193 = vpop.f32.mrf.mxu0
    %v194 = vpop.f32.mrf.mxu0
    %195 = vdwg.mxu0
    %196 = vadd.xlane.f32.xlu0 %v191
    %v197 = vpop.xlane.xlu0 %196
    %v198 = vmul.f32 %v197, 0.03125
    %v199 = vlaneseq
    %v200 = vand.u32 %v199, 127
    %vm201 = vcmp.lt.s32.totalorder %v200, 32
    %v202 = vsub.f32 %v191, %v198
    %v203 = vsel %vm201, %v202, 0.0
    %v204 = vmul.f32 %v203, %v203
    %205 = vadd.xlane.f32.xlu0 %v204
    %v206 = vpop.xlane.xlu0 %205
    %v207 = vmul.f32 %v206, 0.03125
    %v208 = vadd.f32 %v207, 1e-05
    %v209 = vrsqrt.pop %v208
    %v210 = vmul.f32 %v203, %v209
    %v211 = vlaneseq
    %v212 = vshrl.u32 %v211, 7
    %v213 = vsub.s32 1, %v212
    %v214 = vrot.slane %v86, %v213
    %v215 = vmul.f32 %v210, %v214
    %v216 = vlaneseq
    %v217 = vshrl.u32 %v216, 7
    %v218 = vsub.s32 2, %v217
    %v219 = vrot.slane %v86, %v218
    %v220 = vadd.f32 %v215, %v219
    %v221 = vtanh.pop %v220
    %v222 = vpack.c.bf16 %v221, %v221
    %v223 = vld [vmem:[#allocation7] sm:$0xf]
    %v224 = vld [vmem:[#allocation7 + $0x4] sm:$0xf]
    %v225 = vld [vmem:[#allocation7 + $0x8] sm:$0xf]
    %v226 = vld [vmem:[#allocation7 + $0xc] sm:$0xf]
    %v227 = vld [vmem:[#allocation7 + $0x10] sm:$0xf]
    %v228 = vld [vmem:[#allocation7 + $0x14] sm:$0xf]
    %v229 = vld [vmem:[#allocation7 + $0x18] sm:$0xf]
    %v230 = vld [vmem:[#allocation7 + $0x1c] sm:$0xf]
    %v231 = vld [vmem:[#allocation7 + $0x20] sm:$0xf]
    %v232 = vld [vmem:[#allocation7 + $0x24] sm:$0xf]
    %v233 = vld [vmem:[#allocation7 + $0x28] sm:$0xf]
    %v234 = vld [vmem:[#allocation7 + $0x2c] sm:$0xf]
    %v235 = vld [vmem:[#allocation7 + $0x30] sm:$0xf]
    %v236 = vld [vmem:[#allocation7 + $0x34] sm:$0xf]
    %v237 = vld [vmem:[#allocation7 + $0x38] sm:$0xf]
    %v238 = vld [vmem:[#allocation7 + $0x3c] sm:$0xf]
    %v239 = vlaneseq
    %v240 = vshrl.u32 %v239, 7
    %v241 = vsub.s32 3, %v240
    %v242 = vrot.slane %v86, %v241
    %v259 = vunpack.c.l.b16 %v223
    %v260 = vunpack.c.l.b16 %v224
    %v261 = vunpack.c.l.b16 %v225
    %v262 = vunpack.c.l.b16 %v226
    %v263 = vunpack.c.l.b16 %v227
    %v264 = vunpack.c.l.b16 %v228
    %v265 = vunpack.c.l.b16 %v229
    %v266 = vunpack.c.l.b16 %v230
    %v267 = vunpack.c.l.b16 %v231
    %v268 = vunpack.c.l.b16 %v232
    %v269 = vunpack.c.l.b16 %v233
    %v270 = vunpack.c.l.b16 %v234
    %v271 = vunpack.c.l.b16 %v235
    %v272 = vunpack.c.l.b16 %v236
    %v273 = vunpack.c.l.b16 %v237
    %v274 = vunpack.c.l.b16 %v238
    %v275 = vpack.c.b16 %v260, %v259
    %v276 = vpack.c.b16 %v262, %v261
    %v277 = vpack.c.b16 %v264, %v263
    %v278 = vpack.c.b16 %v266, %v265
    %v279 = vpack.c.b16 %v268, %v267
    %v280 = vpack.c.b16 %v270, %v269
    %v281 = vpack.c.b16 %v272, %v271
    %v282 = vpack.c.b16 %v274, %v273
    %291 = vmatprep.subr.bf16.mxu0 0
    %292 = vmatpush1.bf16.msra.mxu0 %v282
    %293 = vmatprep.subr.bf16.mxu0 0
    %294 = vmatpush1.bf16.msra.mxu0 %v281
    %295 = vmatprep.subr.bf16.mxu0 0
    %296 = vmatpush1.bf16.msra.mxu0 %v280
    %297 = vmatprep.subr.bf16.mxu0 0
    %298 = vmatpush1.bf16.msra.mxu0 %v279
    %299 = vmatprep.subr.bf16.mxu0 0
    %300 = vmatpush1.bf16.msra.mxu0 %v278
    %301 = vmatprep.subr.bf16.mxu0 0
    %302 = vmatpush1.bf16.msra.mxu0 %v277
    %303 = vmatprep.subr.bf16.mxu0 0
    %304 = vmatpush1.bf16.msra.mxu0 %v276
    %305 = vmatprep.subr.bf16.mxu0 0
    %306 = vmatpush1.bf16.msra.mxu0 %v275
    %307 = vmatprep.subr.bf16.mxu0 0
    %308 = vmatpush2.bf16.msra.mxu0 0
    %309 = vmatprep.subr.bf16.mxu0 0
    %310 = vmatpush2.bf16.msra.mxu0 0
    %311 = vmatprep.subr.bf16.mxu0 0
    %312 = vmatpush2.bf16.msra.mxu0 0
    %313 = vmatprep.subr.bf16.mxu0 0
    %314 = vmatpush2.bf16.msra.mxu0 0
    %315 = vmatprep.subr.bf16.mxu0 0
    %316 = vmatpush2.bf16.msra.mxu0 0
    %317 = vmatprep.subr.bf16.mxu0 0
    %318 = vmatpush2.bf16.msra.mxu0 0
    %319 = vmatprep.subr.bf16.mxu0 0
    %320 = vmatpush2.bf16.msra.mxu0 0
    %321 = vmatprep.subr.bf16.mxu0 0
    %322 = vmatpush2.bf16.msra.mxu0 0
    %323 = vmatprep.mubr.bf16.mxu0 0
    %324 = vmatmul.mubr.bf16.gmra.mxu0 %v222
    %v325 = vpop.f32.mrf.mxu0
    %v326 = vadd.f32 %v242, %v325
    %v327 = vpop.f32.mrf.mxu0
    %v328 = vpop.f32.mrf.mxu0
    %v329 = vpop.f32.mrf.mxu0
    %330 = vdwg.mxu0
    %v331 = vmax.f32 %v326, 0.0
    %v332 = vpack.c.bf16 %v331, %v331
    %v333 = vld [vmem:[#allocation8] sm:$0xf]
    %v334 = vld [vmem:[#allocation8 + $0x4] sm:$0xf]
    %v335 = vld [vmem:[#allocation8 + $0x8] sm:$0xf]
    %v336 = vld [vmem:[#allocation8 + $0xc] sm:$0xf]
    %v337 = vld [vmem:[#allocation8 + $0x10] sm:$0xf]
    %v338 = vld [vmem:[#allocation8 + $0x14] sm:$0xf]
    %v339 = vld [vmem:[#allocation8 + $0x18] sm:$0xf]
    %v340 = vld [vmem:[#allocation8 + $0x1c] sm:$0xf]
    %v341 = vld [vmem:[#allocation8 + $0x20] sm:$0xf]
    %v342 = vld [vmem:[#allocation8 + $0x24] sm:$0xf]
    %v343 = vld [vmem:[#allocation8 + $0x28] sm:$0xf]
    %v344 = vld [vmem:[#allocation8 + $0x2c] sm:$0xf]
    %v345 = vld [vmem:[#allocation8 + $0x30] sm:$0xf]
    %v346 = vld [vmem:[#allocation8 + $0x34] sm:$0xf]
    %v347 = vld [vmem:[#allocation8 + $0x38] sm:$0xf]
    %v348 = vld [vmem:[#allocation8 + $0x3c] sm:$0xf]
    %v349 = vlaneseq
    %v350 = vshrl.u32 %v349, 7
    %v351 = vsub.s32 4, %v350
    %v352 = vrot.slane %v86, %v351
    %v369 = vunpack.c.l.b16 %v333
    %v370 = vunpack.c.l.b16 %v334
    %v371 = vunpack.c.l.b16 %v335
    %v372 = vunpack.c.l.b16 %v336
    %v373 = vunpack.c.l.b16 %v337
    %v374 = vunpack.c.l.b16 %v338
    %v375 = vunpack.c.l.b16 %v339
    %v376 = vunpack.c.l.b16 %v340
    %v377 = vunpack.c.l.b16 %v341
    %v378 = vunpack.c.l.b16 %v342
    %v379 = vunpack.c.l.b16 %v343
    %v380 = vunpack.c.l.b16 %v344
    %v381 = vunpack.c.l.b16 %v345
    %v382 = vunpack.c.l.b16 %v346
    %v383 = vunpack.c.l.b16 %v347
    %v384 = vunpack.c.l.b16 %v348
    %v385 = vpack.c.b16 %v370, %v369
    %v386 = vpack.c.b16 %v372, %v371
    %v387 = vpack.c.b16 %v374, %v373
    %v388 = vpack.c.b16 %v376, %v375
    %v389 = vpack.c.b16 %v378, %v377
    %v390 = vpack.c.b16 %v380, %v379
    %v391 = vpack.c.b16 %v382, %v381
    %v392 = vpack.c.b16 %v384, %v383
    %401 = vmatprep.subr.bf16.mxu0 0
    %402 = vmatpush1.bf16.msra.mxu0 %v392
    %403 = vmatprep.subr.bf16.mxu0 0
    %404 = vmatpush1.bf16.msra.mxu0 %v391
    %405 = vmatprep.subr.bf16.mxu0 0
    %406 = vmatpush1.bf16.msra.mxu0 %v390
    %407 = vmatprep.subr.bf16.mxu0 0
    %408 = vmatpush1.bf16.msra.mxu0 %v389
    %409 = vmatprep.subr.bf16.mxu0 0
    %410 = vmatpush1.bf16.msra.mxu0 %v388
    %411 = vmatprep.subr.bf16.mxu0 0
    %412 = vmatpush1.bf16.msra.mxu0 %v387
    %413 = vmatprep.subr.bf16.mxu0 0
    %414 = vmatpush1.bf16.msra.mxu0 %v386
    %415 = vmatprep.subr.bf16.mxu0 0
    %416 = vmatpush1.bf16.msra.mxu0 %v385
    %417 = vmatprep.subr.bf16.mxu0 0
    %418 = vmatpush2.bf16.msra.mxu0 0
    %419 = vmatprep.subr.bf16.mxu0 0
    %420 = vmatpush2.bf16.msra.mxu0 0
    %421 = vmatprep.subr.bf16.mxu0 0
    %422 = vmatpush2.bf16.msra.mxu0 0
    %423 = vmatprep.subr.bf16.mxu0 0
    %424 = vmatpush2.bf16.msra.mxu0 0
    %425 = vmatprep.subr.bf16.mxu0 0
    %426 = vmatpush2.bf16.msra.mxu0 0
    %427 = vmatprep.subr.bf16.mxu0 0
    %428 = vmatpush2.bf16.msra.mxu0 0
    %429 = vmatprep.subr.bf16.mxu0 0
    %430 = vmatpush2.bf16.msra.mxu0 0
    %431 = vmatprep.subr.bf16.mxu0 0
    %432 = vmatpush2.bf16.msra.mxu0 0
    %433 = vmatprep.mubr.bf16.mxu0 0
    %434 = vmatmul.mubr.bf16.gmra.mxu0 %v332
    %v435 = vpop.f32.mrf.mxu0
    %v436 = vadd.f32 %v352, %v435
    %v437 = vpop.f32.mrf.mxu0
    %v438 = vpop.f32.mrf.mxu0
    %v439 = vpop.f32.mrf.mxu0
    %440 = vdwg.mxu0
    %v441 = vtanh.pop %v436
    %442 = vst [vmem:[#allocation11] sm:$0xff] %v441
    // Predicated region
    $region42: #{tpu_custom_call.1} parent=1 // pred_check
      _
    $region43: #{tpu_custom_call.1} parent=1 // pred_check_branch
      %444 = sbr.rel (0) target = $region45
    $region44: #{tpu_custom_call.1} parent=1 // pred_region
      %s446 = ssub.s32 128, 128
      %447 = vsyncadd [#allocation4], %s446
      %s449 = sshll.u32 [#allocation11], 4
      %s450 = int_to_ptr.vmem [resolvable:$true] %s449
      %452 = dma.vmem_to_hbm [thread:$0]  %s450, 128, %s5, [#allocation4]
    $region45: #{tpu_custom_call.1} parent=1 // pred_fallthru
      _
    // Predicated region
    $region46: #{tpu_custom_call.1} parent=1 // pred_check
      _
    $region47: #{tpu_custom_call.1} parent=1 // pred_check_branch
      %454 = sbr.rel (0) target = $region49
    $region48: #{tpu_custom_call.1} parent=1 // pred_region
      %455 = dma.done [#allocation4], 128
    $region49: #{tpu_custom_call.1} parent=1 // pred_fallthru
      _
    %456 = vsyncpa [#allocation3], 1
    %457 = vsyncpa [#allocation6], 1
    %458 = vsyncpa [#allocation9], 1
    %459 = vsyncpa [#allocation4], 1

</llo_original>
